<compile_context>
chip_gen: v6e
topology: v6e:2x2x1
jax: 0.10.0
libtpu: 0.0.40
codegen_flags: <defaults>
</compile_context>

<pallas_src>
import functools

import jax
import jax.numpy as jnp
from jax.experimental import pallas as pl
from jax.experimental.pallas import tpu as pltpu


def _round_up(x, m):
    return (x + m - 1) // m * m


def _mlp_fused_kernel(*refs, num_layers):
    """Fused MLP: all Linear(+ReLU) layers on a VMEM-resident activation.

    refs = (x_ref, w_0..w_{L-1}, b_0..b_{L-1}, o_ref)
      x_ref: (tm, Din0_pad)            zero-padded batch tile (f32)
      w_l:   (Din_pad_l, Dout_pad_l)   zero-padded bf16 weights, layout (in, out)
      b_l:   (1, Dout_pad_l)           zero-padded f32 biases
      o_ref: (tm, Dout_pad_last)       output tile (f32)
    """
    x_ref = refs[0]
    w_refs = refs[1:1 + num_layers]
    b_refs = refs[1 + num_layers:1 + 2 * num_layers]
    o_ref = refs[1 + 2 * num_layers]

    acc = x_ref[...].astype(jnp.float32)
    for l in range(num_layers):          # static unroll (small L)
        w = w_refs[l][...]
        # bf16 operands -> MXU, f32 accumulation.
        acc = jnp.dot(acc.astype(w.dtype), w, preferred_element_type=jnp.float32)
        acc = acc + b_refs[l][...]        # (1, Dout_pad) broadcasts; f32 epilogue
        if l != num_layers - 1:
            acc = jnp.maximum(acc, 0.0)
    o_ref[...] = acc.astype(o_ref.dtype)


def prepare_mlp_params(params, compute_dtype=jnp.bfloat16):
    """One-time padding + casting of the weights/biases (hoisted out of forward).

    params: list of (w, b) with w: (din, dout) f32, b: (1, dout) f32.
    Returns list of (w_pad bf16 (din_pad, dout_pad), b_pad f32 (1, dout_pad)).
    """
    prepared = []
    for (w, b) in params:
        din, dout = w.shape
        din_p, dout_p = _round_up(din, 128), _round_up(dout, 128)
        w_p = jnp.zeros((din_p, dout_p), compute_dtype)
        w_p = w_p.at[:din, :dout].set(w.astype(compute_dtype))
        b_p = jnp.zeros((1, dout_p), jnp.float32)
        b_p = b_p.at[:, :dout].set(b.reshape(1, -1).astype(jnp.float32))
        prepared.append((w_p, b_p))
    return prepared


def _weight_spec(shape, single_buffer):
    index_map = lambda i: (0,) * len(shape)     # grid-invariant block
    if single_buffer:
        return pl.BlockSpec(shape, index_map, pipeline_mode=pl.Buffered(1))
    return pl.BlockSpec(shape, index_map)


@functools.partial(jax.jit, static_argnames=("single_buffer_weights",))
def mlp_pallas(x, prepared_params, single_buffer_weights=True):
    """Fused MLP forward.

    x:               (B, input_dim) f32
    prepared_params: output of prepare_mlp_params (padded bf16 W, padded f32 b)
    Returns (B, output_dim) f32.
    """
    B, input_dim = x.shape
    L = len(prepared_params)
    din_pad0 = prepared_params[0][0].shape[0]
    dout_pad_last = prepared_params[-1][0].shape[1]

    # Batch tile: multiple of 8 sublanes.  >=2 tiles once B >= 256 (so v7x's two
    # TensorCores both get work); 256-wide tiles for big batches (v6e MXU).
    if B >= 512:
        tm = 256
    elif B >= 128:
        tm = 128
    else:
        tm = _round_up(B, 8)
    B_pad = _round_up(B, tm)

    # Only the activation is padded per call (weights were padded once).
    x_p = jnp.zeros((B_pad, din_pad0), x.dtype).at[:B, :input_dim].set(x)

    w_list = [w for (w, _) in prepared_params]
    b_list = [b for (_, b) in prepared_params]

    # --- VMEM budget & explicit limit -------------------------------------
    n_wbuf = 1 if single_buffer_weights else 2
    vmem_bytes = 0
    max_pad = din_pad0
    for (w_p, b_p) in prepared_params:
        vmem_bytes += n_wbuf * (w_p.size * w_p.dtype.itemsize
                                + b_p.size * b_p.dtype.itemsize)
        max_pad = max(max_pad, w_p.shape[1])
    vmem_bytes += 2 * tm * din_pad0 * x.dtype.itemsize        # in tiles (dbl-buf)
    vmem_bytes += 2 * tm * dout_pad_last * x.dtype.itemsize   # out tiles (dbl-buf)
    vmem_bytes += 3 * tm * max_pad * 4                        # f32/bf16 temporaries
    try:
        phys_vmem = pltpu.get_tpu_info().vmem_capacity_bytes
    except Exception:
        phys_vmem = 64 * 1024 * 1024                          # v7x worst case
    vmem_limit = int(min(max(2 * vmem_bytes, 32 * 1024 * 1024),
                         int(0.75 * phys_vmem)))

    # --- Cost estimate with true per-layer padded dims ---------------------
    flops = sum(2 * B_pad * w.shape[0] * w.shape[1] for w in w_list)
    bytes_accessed = (x_p.size * x_p.dtype.itemsize
                      + sum(w.size * w.dtype.itemsize for w in w_list)
                      + sum(b.size * b.dtype.itemsize for b in b_list)
                      + B_pad * dout_pad_last * x.dtype.itemsize)

    in_specs = [pl.BlockSpec((tm, din_pad0), lambda i: (i, 0))]
    in_specs += [_weight_spec(w.shape, single_buffer_weights) for w in w_list]
    in_specs += [_weight_spec(b.shape, single_buffer_weights) for b in b_list]

    kernel = functools.partial(_mlp_fused_kernel, num_layers=L)

    out_p = pl.pallas_call(
        kernel,
        out_shape=jax.ShapeDtypeStruct((B_pad, dout_pad_last), x.dtype),
        grid=(B_pad // tm,),
        in_specs=in_specs,
        out_specs=pl.BlockSpec((tm, dout_pad_last), lambda i: (i, 0)),
        compiler_params=pltpu.CompilerParams(
            dimension_semantics=("parallel",),     # megacore / 2-TC batch shard
            vmem_limit_bytes=vmem_limit,
        ),
        cost_estimate=pl.CostEstimate(
            flops=flops, transcendentals=0, bytes_accessed=bytes_accessed),
    )(x_p, *w_list, *b_list)

    out_dim = None
    # Valid output width = original dout of the last layer; recover it from the
    # bias padding is not possible, so the caller slices.  We slice batch here.
    return out_p[:B]


def init_mlp_params(key, input_dim, output_dim, num_layers, hidden_dim):
    """Deterministic init mirroring the PyTorch layer-size construction."""
    layer_sizes = [input_dim] + [hidden_dim] * num_layers + [output_dim]
    params = []
    for i in range(len(layer_sizes) - 1):
        fan_in, fan_out = layer_sizes[i], layer_sizes[i + 1]
        key, wk, bk = jax.random.split(key, 3)
        bound = 1.0 / (fan_in ** 0.5)  # matches nn.Linear default uniform bound
        # Stored as (in, out) (transpose of PyTorch's (out, in)).
        w = jax.random.uniform(wk, (fan_in, fan_out), jnp.float32, -bound, bound)
        b = jax.random.uniform(bk, (1, fan_out), jnp.float32, -bound, bound)
        params.append((w, b))
    return params


def mlp_reference(x, params):
    """Plain-JAX f32 reference for correctness checking."""
    n = len(params)
    for i, (w, b) in enumerate(params):
        x = x @ w + b
        if i != n - 1:
            x = jnp.maximum(x, 0.0)
    return x


def mlp_reference_bf16(x, params):
    """Reference with the same bf16-matmul / f32-epilogue numerics as the kernel."""
    n = len(params)
    acc = x.astype(jnp.float32)
    for i, (w, b) in enumerate(params):
        acc = jnp.dot(acc.astype(jnp.bfloat16), w.astype(jnp.bfloat16),
                      preferred_element_type=jnp.float32) + b.reshape(1, -1)
        if i != n - 1:
            acc = jnp.maximum(acc, 0.0)
    return acc


if __name__ == "__main__":
    # Shapes implied by the module: MLP(input_dim=32, output_dim=16,
    # num_layers=2, hidden_dim=32) applied to a (batch=8, 32) input.
    input_dim, output_dim, num_layers, hidden_dim = 32, 16, 2, 32
    batch = 8

    key = jax.random.PRNGKey(0)
    key, xk = jax.random.split(key)
    x = jax.random.normal(xk, (batch, input_dim), jnp.float32)

    params = init_mlp_params(key, input_dim, output_dim, num_layers, hidden_dim)
    prepared = prepare_mlp_params(params)   # hoisted: padded/cast ONCE, not per call

    try:
        out_p = mlp_pallas(x, prepared, single_buffer_weights=True)
        out_p = jax.block_until_ready(out_p)
    except Exception:
        # Fallback if this JAX build rejects pl.Buffered(1) on invariant blocks.
        out_p = mlp_pallas(x, prepared, single_buffer_weights=False)
        out_p = jax.block_until_ready(out_p)

    out = out_p[:, :output_dim]             # drop lane padding of the last layer

    ref_f32 = mlp_reference(x, params)
    ref_bf16 = mlp_reference_bf16(x, params)

    assert out.shape == (batch, output_dim)
    # Bit-level match against the same-numerics (bf16 MXU, f32 acc) reference.
    assert jnp.allclose(out, ref_bf16, atol=1e-3, rtol=1e-3)
    # And within bf16-appropriate tolerance of the full-f32 reference.
    assert jnp.allclose(out, ref_f32, atol=5e-2, rtol=5e-2)

    print("KERNEL_OK")
</pallas_src>

<mosaic_0001>
module attributes {stable_mosaic.version = 11 : i64} {
  func.func @_mlp_fused_kernel(%arg0: i32, %arg1: memref<8x128xf32, #tpu.memory_space<vmem>>, %arg2: memref<128x128xbf16, #tpu.memory_space<vmem>>, %arg3: memref<128x128xbf16, #tpu.memory_space<vmem>>, %arg4: memref<128x128xbf16, #tpu.memory_space<vmem>>, %arg5: memref<1x128xf32, #tpu.memory_space<vmem>>, %arg6: memref<1x128xf32, #tpu.memory_space<vmem>>, %arg7: memref<1x128xf32, #tpu.memory_space<vmem>>, %arg8: memref<8x128xf32, #tpu.memory_space<vmem>>) attributes {dimension_semantics = [#tpu.dimension_semantics<parallel>], iteration_bounds = array<i64: 1>, scalar_prefetch = 0 : i64, scratch_operands = 0 : i64, tpu.core_type = #tpu.core_type<tc>, window_params = [{transform_indices = @transform_0, window_bounds = array<i64: 8, 128>}, {pipeline_mode = #tpu.pipeline_mode<synchronous>, transform_indices = @transform_1, window_bounds = array<i64: 128, 128>}, {pipeline_mode = #tpu.pipeline_mode<synchronous>, transform_indices = @transform_2, window_bounds = array<i64: 128, 128>}, {pipeline_mode = #tpu.pipeline_mode<synchronous>, transform_indices = @transform_3, window_bounds = array<i64: 128, 128>}, {pipeline_mode = #tpu.pipeline_mode<synchronous>, transform_indices = @transform_4, window_bounds = array<i64: 1, 128>}, {pipeline_mode = #tpu.pipeline_mode<synchronous>, transform_indices = @transform_5, window_bounds = array<i64: 1, 128>}, {pipeline_mode = #tpu.pipeline_mode<synchronous>, transform_indices = @transform_6, window_bounds = array<i64: 1, 128>}, {transform_indices = @transform_7, window_bounds = array<i64: 8, 128>}]} {
    %c0 = arith.constant 0 : index
    %c0_0 = arith.constant 0 : index
    %0 = vector.load %arg1[%c0, %c0_0] : memref<8x128xf32, #tpu.memory_space<vmem>>, vector<8x128xf32>
    %c0_1 = arith.constant 0 : index
    %c0_2 = arith.constant 0 : index
    %1 = vector.load %arg2[%c0_1, %c0_2] : memref<128x128xbf16, #tpu.memory_space<vmem>>, vector<128x128xbf16>
    %2 = arith.truncf %0 : vector<8x128xf32> to vector<8x128xbf16>
    %cst = arith.constant dense<0.000000e+00> : vector<8x128xf32>
    %3 = tpu.matmul %2, %1, %cst {dimension_numbers = #tpu.dot_dimension_numbers<[1], [0], [0], [1], [0, 0, 1, 1], [], []>} : vector<8x128xbf16>, vector<128x128xbf16>, vector<8x128xf32> -> vector<8x128xf32>
    %c0_3 = arith.constant 0 : index
    %c0_4 = arith.constant 0 : index
    %4 = vector.load %arg5[%c0_3, %c0_4] : memref<1x128xf32, #tpu.memory_space<vmem>>, vector<1x128xf32>
    %5 = vector.broadcast %4 : vector<1x128xf32> to vector<8x128xf32>
    %6 = arith.addf %3, %5 : vector<8x128xf32>
    %cst_5 = arith.constant 0.000000e+00 : f32
    %7 = vector.broadcast %cst_5 : f32 to vector<8x128xf32>
    %8 = arith.maximumf %6, %7 : vector<8x128xf32>
    %c0_6 = arith.constant 0 : index
    %c0_7 = arith.constant 0 : index
    %9 = vector.load %arg3[%c0_6, %c0_7] : memref<128x128xbf16, #tpu.memory_space<vmem>>, vector<128x128xbf16>
    %10 = arith.truncf %8 : vector<8x128xf32> to vector<8x128xbf16>
    %cst_8 = arith.constant dense<0.000000e+00> : vector<8x128xf32>
    %11 = tpu.matmul %10, %9, %cst_8 {dimension_numbers = #tpu.dot_dimension_numbers<[1], [0], [0], [1], [0, 0, 1, 1], [], []>} : vector<8x128xbf16>, vector<128x128xbf16>, vector<8x128xf32> -> vector<8x128xf32>
    %c0_9 = arith.constant 0 : index
    %c0_10 = arith.constant 0 : index
    %12 = vector.load %arg6[%c0_9, %c0_10] : memref<1x128xf32, #tpu.memory_space<vmem>>, vector<1x128xf32>
    %13 = vector.broadcast %12 : vector<1x128xf32> to vector<8x128xf32>
    %14 = arith.addf %11, %13 : vector<8x128xf32>
    %cst_11 = arith.constant 0.000000e+00 : f32
    %15 = vector.broadcast %cst_11 : f32 to vector<8x128xf32>
    %16 = arith.maximumf %14, %15 : vector<8x128xf32>
    %c0_12 = arith.constant 0 : index
    %c0_13 = arith.constant 0 : index
    %17 = vector.load %arg4[%c0_12, %c0_13] : memref<128x128xbf16, #tpu.memory_space<vmem>>, vector<128x128xbf16>
    %18 = arith.truncf %16 : vector<8x128xf32> to vector<8x128xbf16>
    %cst_14 = arith.constant dense<0.000000e+00> : vector<8x128xf32>
    %19 = tpu.matmul %18, %17, %cst_14 {dimension_numbers = #tpu.dot_dimension_numbers<[1], [0], [0], [1], [0, 0, 1, 1], [], []>} : vector<8x128xbf16>, vector<128x128xbf16>, vector<8x128xf32> -> vector<8x128xf32>
    %c0_15 = arith.constant 0 : index
    %c0_16 = arith.constant 0 : index
    %20 = vector.load %arg7[%c0_15, %c0_16] : memref<1x128xf32, #tpu.memory_space<vmem>>, vector<1x128xf32>
    %21 = vector.broadcast %20 : vector<1x128xf32> to vector<8x128xf32>
    %22 = arith.addf %19, %21 : vector<8x128xf32>
    %c0_17 = arith.constant 0 : index
    %c0_18 = arith.constant 0 : index
    %23 = vector.load %arg8[%c0_17, %c0_18] : memref<8x128xf32, #tpu.memory_space<vmem>>, vector<8x128xf32>
    tpu.vector_store %arg8[%c0_17, %c0_18], %22 {strides = array<i32>} : memref<8x128xf32, #tpu.memory_space<vmem>>, vector<8x128xf32>,
    return
  }
  func.func @transform_0(%arg0: i32) -> (i32, i32) {
    %c0_i32 = arith.constant 0 : i32
    %c0_i32_0 = arith.constant 0 : i32
    return %arg0, %c0_i32 : i32, i32
  }
  func.func @transform_1(%arg0: i32) -> (i32, i32) {
    %c0_i32 = arith.constant 0 : i32
    %c0_i32_0 = arith.constant 0 : i32
    %c0_i32_1 = arith.constant 0 : i32
    return %c0_i32, %c0_i32_0 : i32, i32
  }
  func.func @transform_2(%arg0: i32) -> (i32, i32) {
    %c0_i32 = arith.constant 0 : i32
    %c0_i32_0 = arith.constant 0 : i32
    %c0_i32_1 = arith.constant 0 : i32
    return %c0_i32, %c0_i32_0 : i32, i32
  }
  func.func @transform_3(%arg0: i32) -> (i32, i32) {
    %c0_i32 = arith.constant 0 : i32
    %c0_i32_0 = arith.constant 0 : i32
    %c0_i32_1 = arith.constant 0 : i32
    return %c0_i32, %c0_i32_0 : i32, i32
  }
  func.func @transform_4(%arg0: i32) -> (i32, i32) {
    %c0_i32 = arith.constant 0 : i32
    %c0_i32_0 = arith.constant 0 : i32
    %c0_i32_1 = arith.constant 0 : i32
    return %c0_i32, %c0_i32_0 : i32, i32
  }
  func.func @transform_5(%arg0: i32) -> (i32, i32) {
    %c0_i32 = arith.constant 0 : i32
    %c0_i32_0 = arith.constant 0 : i32
    %c0_i32_1 = arith.constant 0 : i32
    return %c0_i32, %c0_i32_0 : i32, i32
  }
  func.func @transform_6(%arg0: i32) -> (i32, i32) {
    %c0_i32 = arith.constant 0 : i32
    %c0_i32_0 = arith.constant 0 : i32
    %c0_i32_1 = arith.constant 0 : i32
    return %c0_i32, %c0_i32_0 : i32, i32
  }
  func.func @transform_7(%arg0: i32) -> (i32, i32) {
    %c0_i32 = arith.constant 0 : i32
    %c0_i32_0 = arith.constant 0 : i32
    return %arg0, %c0_i32 : i32, i32
  }
}

module attributes {stable_mosaic.version = 11 : i64} {
  func.func @_mlp_fused_kernel(%arg0: i32, %arg1: memref<8x128xf32, #tpu.memory_space<vmem>>, %arg2: memref<128x128xbf16, #tpu.memory_space<vmem>>, %arg3: memref<128x128xbf16, #tpu.memory_space<vmem>>, %arg4: memref<128x128xbf16, #tpu.memory_space<vmem>>, %arg5: memref<1x128xf32, #tpu.memory_space<vmem>>, %arg6: memref<1x128xf32, #tpu.memory_space<vmem>>, %arg7: memref<1x128xf32, #tpu.memory_space<vmem>>, %arg8: memref<8x128xf32, #tpu.memory_space<vmem>>) attributes {dimension_semantics = [#tpu.dimension_semantics<parallel>], iteration_bounds = array<i64: 1>, scalar_prefetch = 0 : i64, scratch_operands = 0 : i64, tpu.core_type = #tpu.core_type<tc>, window_params = [{transform_indices = @transform_0, window_bounds = array<i64: 8, 128>}, {pipeline_mode = #tpu.pipeline_mode<synchronous>, transform_indices = @transform_1, window_bounds = array<i64: 128, 128>}, {pipeline_mode = #tpu.pipeline_mode<synchronous>, transform_indices = @transform_2, window_bounds = array<i64: 128, 128>}, {pipeline_mode = #tpu.pipeline_mode<synchronous>, transform_indices = @transform_3, window_bounds = array<i64: 128, 128>}, {pipeline_mode = #tpu.pipeline_mode<synchronous>, transform_indices = @transform_4, window_bounds = array<i64: 1, 128>}, {pipeline_mode = #tpu.pipeline_mode<synchronous>, transform_indices = @transform_5, window_bounds = array<i64: 1, 128>}, {pipeline_mode = #tpu.pipeline_mode<synchronous>, transform_indices = @transform_6, window_bounds = array<i64: 1, 128>}, {transform_indices = @transform_7, window_bounds = array<i64: 8, 128>}]} {
    %c0 = arith.constant 0 : index
    %c0_0 = arith.constant 0 : index
    %0 = vector.load %arg1[%c0, %c0_0] : memref<8x128xf32, #tpu.memory_space<vmem>>, vector<8x128xf32>
    %c0_1 = arith.constant 0 : index
    %c0_2 = arith.constant 0 : index
    %1 = vector.load %arg2[%c0_1, %c0_2] : memref<128x128xbf16, #tpu.memory_space<vmem>>, vector<128x128xbf16>
    %2 = arith.truncf %0 : vector<8x128xf32> to vector<8x128xbf16>
    %cst = arith.constant dense<0.000000e+00> : vector<8x128xf32>
    %3 = tpu.matmul %2, %1, %cst {dimension_numbers = #tpu.dot_dimension_numbers<[1], [0], [0], [1], [0, 0, 1, 1], [], []>} : vector<8x128xbf16>, vector<128x128xbf16>, vector<8x128xf32> -> vector<8x128xf32>
    %c0_3 = arith.constant 0 : index
    %c0_4 = arith.constant 0 : index
    %4 = vector.load %arg5[%c0_3, %c0_4] : memref<1x128xf32, #tpu.memory_space<vmem>>, vector<1x128xf32>
    %5 = vector.broadcast %4 : vector<1x128xf32> to vector<8x128xf32>
    %6 = arith.addf %3, %5 : vector<8x128xf32>
    %cst_5 = arith.constant 0.000000e+00 : f32
    %7 = vector.broadcast %cst_5 : f32 to vector<8x128xf32>
    %8 = arith.maximumf %6, %7 : vector<8x128xf32>
    %c0_6 = arith.constant 0 : index
    %c0_7 = arith.constant 0 : index
    %9 = vector.load %arg3[%c0_6, %c0_7] : memref<128x128xbf16, #tpu.memory_space<vmem>>, vector<128x128xbf16>
    %10 = arith.truncf %8 : vector<8x128xf32> to vector<8x128xbf16>
    %cst_8 = arith.constant dense<0.000000e+00> : vector<8x128xf32>
    %11 = tpu.matmul %10, %9, %cst_8 {dimension_numbers = #tpu.dot_dimension_numbers<[1], [0], [0], [1], [0, 0, 1, 1], [], []>} : vector<8x128xbf16>, vector<128x128xbf16>, vector<8x128xf32> -> vector<8x128xf32>
    %c0_9 = arith.constant 0 : index
    %c0_10 = arith.constant 0 : index
    %12 = vector.load %arg6[%c0_9, %c0_10] : memref<1x128xf32, #tpu.memory_space<vmem>>, vector<1x128xf32>
    %13 = vector.broadcast %12 : vector<1x128xf32> to vector<8x128xf32>
    %14 = arith.addf %11, %13 : vector<8x128xf32>
    %cst_11 = arith.constant 0.000000e+00 : f32
    %15 = vector.broadcast %cst_11 : f32 to vector<8x128xf32>
    %16 = arith.maximumf %14, %15 : vector<8x128xf32>
    %c0_12 = arith.constant 0 : index
    %c0_13 = arith.constant 0 : index
    %17 = vector.load %arg4[%c0_12, %c0_13] : memref<128x128xbf16, #tpu.memory_space<vmem>>, vector<128x128xbf16>
    %18 = arith.truncf %16 : vector<8x128xf32> to vector<8x128xbf16>
    %cst_14 = arith.constant dense<0.000000e+00> : vector<8x128xf32>
    %19 = tpu.matmul %18, %17, %cst_14 {dimension_numbers = #tpu.dot_dimension_numbers<[1], [0], [0], [1], [0, 0, 1, 1], [], []>} : vector<8x128xbf16>, vector<128x128xbf16>, vector<8x128xf32> -> vector<8x128xf32>
    %c0_15 = arith.constant 0 : index
    %c0_16 = arith.constant 0 : index
    %20 = vector.load %arg7[%c0_15, %c0_16] : memref<1x128xf32, #tpu.memory_space<vmem>>, vector<1x128xf32>
    %21 = vector.broadcast %20 : vector<1x128xf32> to vector<8x128xf32>
    %22 = arith.addf %19, %21 : vector<8x128xf32>
    %c0_17 = arith.constant 0 : index
    %c0_18 = arith.constant 0 : index
    %23 = vector.load %arg8[%c0_17, %c0_18] : memref<8x128xf32, #tpu.memory_space<vmem>>, vector<8x128xf32>
    tpu.vector_store %arg8[%c0_17, %c0_18], %22 {strides = array<i32>} : memref<8x128xf32, #tpu.memory_space<vmem>>, vector<8x128xf32>,
    return
  }
  func.func @transform_0(%arg0: i32) -> (i32, i32) {
    %c0_i32 = arith.constant 0 : i32
    %c0_i32_0 = arith.constant 0 : i32
    return %arg0, %c0_i32 : i32, i32
  }
  func.func @transform_1(%arg0: i32) -> (i32, i32) {
    %c0_i32 = arith.constant 0 : i32
    %c0_i32_0 = arith.constant 0 : i32
    %c0_i32_1 = arith.constant 0 : i32
    return %c0_i32, %c0_i32_0 : i32, i32
  }
  func.func @transform_2(%arg0: i32) -> (i32, i32) {
    %c0_i32 = arith.constant 0 : i32
    %c0_i32_0 = arith.constant 0 : i32
    %c0_i32_1 = arith.constant 0 : i32
    return %c0_i32, %c0_i32_0 : i32, i32
  }
  func.func @transform_3(%arg0: i32) -> (i32, i32) {
    %c0_i32 = arith.constant 0 : i32
    %c0_i32_0 = arith.constant 0 : i32
    %c0_i32_1 = arith.constant 0 : i32
    return %c0_i32, %c0_i32_0 : i32, i32
  }
  func.func @transform_4(%arg0: i32) -> (i32, i32) {
    %c0_i32 = arith.constant 0 : i32
    %c0_i32_0 = arith.constant 0 : i32
    %c0_i32_1 = arith.constant 0 : i32
    return %c0_i32, %c0_i32_0 : i32, i32
  }
  func.func @transform_5(%arg0: i32) -> (i32, i32) {
    %c0_i32 = arith.constant 0 : i32
    %c0_i32_0 = arith.constant 0 : i32
    %c0_i32_1 = arith.constant 0 : i32
    return %c0_i32, %c0_i32_0 : i32, i32
  }
  func.func @transform_6(%arg0: i32) -> (i32, i32) {
    %c0_i32 = arith.constant 0 : i32
    %c0_i32_0 = arith.constant 0 : i32
    %c0_i32_1 = arith.constant 0 : i32
    return %c0_i32, %c0_i32_0 : i32, i32
  }
  func.func @transform_7(%arg0: i32) -> (i32, i32) {
    %c0_i32 = arith.constant 0 : i32
    %c0_i32_0 = arith.constant 0 : i32
    return %arg0, %c0_i32 : i32, i32
  }
}

</mosaic_0001>

<llo_original>
// kernel: mlp_pallas.1
$region0: #{mlp_pallas.1}
  #allocation0 [shape = 'u32[]', space=smem, size = 0x4, offset = 0x4, fixed_abs, tag = 'smem constant byte address 0x4 - core index']
  #allocation1 [shape = 'u32[144,128]{1,0:T(1,128)}', space=vmem, size = 0x12000, scoped, tag = 'internal scratch']
  %s0 = inlined_call_operand.vmem [shape: f32[8,128], index: 0, kind: input, shape index: {}]
  %s1 = inlined_call_operand.hbm [shape: bf16[128,128], index: 1, kind: input, shape index: {}]
  %s2 = inlined_call_operand.hbm [shape: bf16[128,128], index: 2, kind: input, shape index: {}]
  %s3 = inlined_call_operand.hbm [shape: bf16[128,128], index: 3, kind: input, shape index: {}]
  %s4 = inlined_call_operand.vmem [shape: f32[1,128], index: 4, kind: input, shape index: {}]
  %s5 = inlined_call_operand.vmem [shape: f32[1,128], index: 5, kind: input, shape index: {}]
  %s6 = inlined_call_operand.vmem [shape: f32[1,128], index: 6, kind: input, shape index: {}]
  %s7 = inlined_call_operand.hbm [shape: f32[8,128], index: 7, kind: output, shape index: {}]
  %s8 = sld [smem:[#allocation0]]
  $region50: #{mlp_pallas.1} parent=0
    _
  %s10 = ssub.s32 1, %s8
  %s11 = scalar_select 0, %s10, %s8
  $region1: #{mlp_pallas.1} parent=0
    #allocation2 [shape = 'u8[32768]{0}', space=vmem, size = 0x8000, scoped, tag = 'input window, operand 1, single buffered']
    #allocation3 [shape = 's32[1]{0}', space=sflag, size = 0x4, scoped, tag = 'scoped memory for mlp_pallas.1']
    #allocation4 [shape = 's32[1]{0}', space=sflag, size = 0x4, scoped, tag = 'scoped memory for mlp_pallas.1']
    #allocation5 [shape = 'u8[32768]{0}', space=vmem, size = 0x8000, scoped, tag = 'input window, operand 2, single buffered']
    #allocation6 [shape = 's32[1]{0}', space=sflag, size = 0x4, scoped, tag = 'scoped memory for mlp_pallas.1']
    #allocation7 [shape = 'u8[32768]{0}', space=vmem, size = 0x8000, scoped, tag = 'input window, operand 3, single buffered']
    #allocation8 [shape = 'u8[4096]{0}', space=vmem, size = 0x1000, scoped, tag = 'output window, operand 0, single buffered']
    %12 = vsyncpa [#allocation3], 0
    %13 = vsyncpa [#allocation6], 0
    %14 = vsyncpa [#allocation4], 0
    // Predicated region
    $region2: #{mlp_pallas.1} parent=1 // pred_check
      _
    $region3: #{mlp_pallas.1} parent=1 // pred_check_branch
      %16 = sbr.rel (0) target = $region5
    $region4: #{mlp_pallas.1} parent=1 // pred_region
      _
    $region5: #{mlp_pallas.1} parent=1 // pred_fallthru
      _
    // Predicated region
    $region6: #{mlp_pallas.1} parent=1 // pred_check
      _
    $region7: #{mlp_pallas.1} parent=1 // pred_check_branch
      %18 = sbr.rel (0) target = $region9
    $region8: #{mlp_pallas.1} parent=1 // pred_region
      %s20 = ssub.s32 1024, 1024
      %21 = vsyncadd [#allocation3], %s20
      %s22 = sshll.u32 [#allocation2], 4
      %s23 = int_to_ptr.vmem [resolvable:$true] %s22
      %28 = dma.hbm_to_vmem [thread:$0]  %s1, 1024, %s23, [#allocation3], 64, 64, 4
    $region9: #{mlp_pallas.1} parent=1 // pred_fallthru
      _
    // Predicated region
    $region10: #{mlp_pallas.1} parent=1 // pred_check
      _
    $region11: #{mlp_pallas.1} parent=1 // pred_check_branch
      %30 = sbr.rel (0) target = $region13
    $region12: #{mlp_pallas.1} parent=1 // pred_region
      %s32 = ssub.s32 1024, 1024
      %33 = vsyncadd [#allocation6], %s32
      %s34 = sshll.u32 [#allocation5], 4
      %s35 = int_to_ptr.vmem [resolvable:$true] %s34
      %40 = dma.hbm_to_vmem [thread:$0]  %s2, 1024, %s35, [#allocation6], 64, 64, 4
    $region13: #{mlp_pallas.1} parent=1 // pred_fallthru
      _
    // Predicated region
    $region14: #{mlp_pallas.1} parent=1 // pred_check
      _
    $region15: #{mlp_pallas.1} parent=1 // pred_check_branch
      %42 = sbr.rel (0) target = $region17
    $region16: #{mlp_pallas.1} parent=1 // pred_region
      %s44 = ssub.s32 1024, 1024
      %45 = vsyncadd [#allocation6], %s44
      %s46 = sshll.u32 [#allocation7], 4
      %s47 = int_to_ptr.vmem [resolvable:$true] %s46
      %52 = dma.hbm_to_vmem [thread:$0]  %s3, 1024, %s47, [#allocation6], 64, 64, 4
    $region17: #{mlp_pallas.1} parent=1 // pred_fallthru
      _
    // Predicated region
    $region18: #{mlp_pallas.1} parent=1 // pred_check
      _
    $region19: #{mlp_pallas.1} parent=1 // pred_check_branch
      %54 = sbr.rel (0) target = $region21
    $region20: #{mlp_pallas.1} parent=1 // pred_region
      _
    $region21: #{mlp_pallas.1} parent=1 // pred_fallthru
      _
    // Predicated region
    $region22: #{mlp_pallas.1} parent=1 // pred_check
      _
    $region23: #{mlp_pallas.1} parent=1 // pred_check_branch
      %56 = sbr.rel (0) target = $region25
    $region24: #{mlp_pallas.1} parent=1 // pred_region
      _
    $region25: #{mlp_pallas.1} parent=1 // pred_fallthru
      _
    // Predicated region
    $region26: #{mlp_pallas.1} parent=1 // pred_check
      _
    $region27: #{mlp_pallas.1} parent=1 // pred_check_branch
      %58 = sbr.rel (0) target = $region29
    $region28: #{mlp_pallas.1} parent=1 // pred_region
      _
    $region29: #{mlp_pallas.1} parent=1 // pred_fallthru
      _
    // Predicated region
    $region30: #{mlp_pallas.1} parent=1 // pred_check
      _
    $region31: #{mlp_pallas.1} parent=1 // pred_check_branch
      %60 = sbr.rel (0) target = $region33
    $region32: #{mlp_pallas.1} parent=1 // pred_region
      %61 = dma.done [#allocation3], 1024
    $region33: #{mlp_pallas.1} parent=1 // pred_fallthru
      _
    // Predicated region
    $region34: #{mlp_pallas.1} parent=1 // pred_check
      _
    $region35: #{mlp_pallas.1} parent=1 // pred_check_branch
      %63 = sbr.rel (0) target = $region37
    $region36: #{mlp_pallas.1} parent=1 // pred_region
      %64 = dma.done [#allocation6], 1024
    $region37: #{mlp_pallas.1} parent=1 // pred_fallthru
      _
    // Predicated region
    $region38: #{mlp_pallas.1} parent=1 // pred_check
      _
    $region39: #{mlp_pallas.1} parent=1 // pred_check_branch
      %66 = sbr.rel (0) target = $region41
    $region40: #{mlp_pallas.1} parent=1 // pred_region
      %67 = dma.done [#allocation6], 1024
    $region41: #{mlp_pallas.1} parent=1 // pred_fallthru
      _
    %v69 = vld [vmem:[%s0] sm:$0xff]
    %v70 = vld [vmem:[#allocation2] sm:$0xf]
    %v71 = vld [vmem:[#allocation2 + $0x4] sm:$0xf]
    %v72 = vld [vmem:[#allocation2 + $0x8] sm:$0xf]
    %v73 = vld [vmem:[#allocation2 + $0xc] sm:$0xf]
    %v74 = vld [vmem:[#allocation2 + $0x10] sm:$0xf]
    %v75 = vld [vmem:[#allocation2 + $0x14] sm:$0xf]
    %v76 = vld [vmem:[#allocation2 + $0x18] sm:$0xf]
    %v77 = vld [vmem:[#allocation2 + $0x1c] sm:$0xf]
    %v78 = vld [vmem:[#allocation2 + $0x20] sm:$0xf]
    %v79 = vld [vmem:[#allocation2 + $0x24] sm:$0xf]
    %v80 = vld [vmem:[#allocation2 + $0x28] sm:$0xf]
    %v81 = vld [vmem:[#allocation2 + $0x2c] sm:$0xf]
    %v82 = vld [vmem:[#allocation2 + $0x30] sm:$0xf]
    %v83 = vld [vmem:[#allocation2 + $0x34] sm:$0xf]
    %v84 = vld [vmem:[#allocation2 + $0x38] sm:$0xf]
    %v85 = vld [vmem:[#allocation2 + $0x3c] sm:$0xf]
    %v86 = vpack.c.bf16 %v69, %v69
    %v87 = vld [vmem:[%s4] sm:$0x1]
    %v89 = vlaneseq
    %v90 = vshrl.u32 %v89, 7
    %v91 = vsub.s32 0, %v90
    %v92 = vrot.slane %v87, %v91
    %v110 = vunpack.c.l.b16 %v70
    %v111 = vunpack.c.l.b16 %v71
    %v112 = vunpack.c.l.b16 %v72
    %v113 = vunpack.c.l.b16 %v73
    %v114 = vunpack.c.l.b16 %v74
    %v115 = vunpack.c.l.b16 %v75
    %v116 = vunpack.c.l.b16 %v76
    %v117 = vunpack.c.l.b16 %v77
    %v118 = vunpack.c.l.b16 %v78
    %v119 = vunpack.c.l.b16 %v79
    %v120 = vunpack.c.l.b16 %v80
    %v121 = vunpack.c.l.b16 %v81
    %v122 = vunpack.c.l.b16 %v82
    %v123 = vunpack.c.l.b16 %v83
    %v124 = vunpack.c.l.b16 %v84
    %v125 = vunpack.c.l.b16 %v85
    %v126 = vpack.c.b16 %v111, %v110
    %v127 = vpack.c.b16 %v113, %v112
    %v128 = vpack.c.b16 %v115, %v114
    %v129 = vpack.c.b16 %v117, %v116
    %v130 = vpack.c.b16 %v119, %v118
    %v131 = vpack.c.b16 %v121, %v120
    %v132 = vpack.c.b16 %v123, %v122
    %v133 = vpack.c.b16 %v125, %v124
    %142 = vmatprep.subr.bf16.mxu0 0
    %143 = vmatpush1.bf16.msra.mxu0 %v133
    %144 = vmatprep.subr.bf16.mxu0 0
    %145 = vmatpush1.bf16.msra.mxu0 %v132
    %146 = vmatprep.subr.bf16.mxu0 0
    %147 = vmatpush1.bf16.msra.mxu0 %v131
    %148 = vmatprep.subr.bf16.mxu0 0
    %149 = vmatpush1.bf16.msra.mxu0 %v130
    %150 = vmatprep.subr.bf16.mxu0 0
    %151 = vmatpush1.bf16.msra.mxu0 %v129
    %152 = vmatprep.subr.bf16.mxu0 0
    %153 = vmatpush1.bf16.msra.mxu0 %v128
    %154 = vmatprep.subr.bf16.mxu0 0
    %155 = vmatpush1.bf16.msra.mxu0 %v127
    %156 = vmatprep.subr.bf16.mxu0 0
    %157 = vmatpush1.bf16.msra.mxu0 %v126
    %158 = vmatprep.subr.bf16.mxu0 0
    %159 = vmatpush2.bf16.msra.mxu0 0
    %160 = vmatprep.subr.bf16.mxu0 0
    %161 = vmatpush2.bf16.msra.mxu0 0
    %162 = vmatprep.subr.bf16.mxu0 0
    %163 = vmatpush2.bf16.msra.mxu0 0
    %164 = vmatprep.subr.bf16.mxu0 0
    %165 = vmatpush2.bf16.msra.mxu0 0
    %166 = vmatprep.subr.bf16.mxu0 0
    %167 = vmatpush2.bf16.msra.mxu0 0
    %168 = vmatprep.subr.bf16.mxu0 0
    %169 = vmatpush2.bf16.msra.mxu0 0
    %170 = vmatprep.subr.bf16.mxu0 0
    %171 = vmatpush2.bf16.msra.mxu0 0
    %172 = vmatprep.subr.bf16.mxu0 0
    %173 = vmatpush2.bf16.msra.mxu0 0
    %174 = vmatprep.mubr.bf16.mxu0 0
    %175 = vmatmul.mubr.bf16.gmra.mxu0 %v86
    %v176 = vpop.f32.mrf.mxu0
    %v177 = vadd.f32 %v92, %v176
    %v178 = vpop.f32.mrf.mxu0
    %v179 = vpop.f32.mrf.mxu0
    %v180 = vpop.f32.mrf.mxu0
    %181 = vdwg.mxu0
    %v182 = vmax.f32 %v177, 0.0
    %v183 = vld [vmem:[#allocation5] sm:$0xf]
    %v184 = vld [vmem:[#allocation5 + $0x4] sm:$0xf]
    %v185 = vld [vmem:[#allocation5 + $0x8] sm:$0xf]
    %v186 = vld [vmem:[#allocation5 + $0xc] sm:$0xf]
    %v187 = vld [vmem:[#allocation5 + $0x10] sm:$0xf]
    %v188 = vld [vmem:[#allocation5 + $0x14] sm:$0xf]
    %v189 = vld [vmem:[#allocation5 + $0x18] sm:$0xf]
    %v190 = vld [vmem:[#allocation5 + $0x1c] sm:$0xf]
    %v191 = vld [vmem:[#allocation5 + $0x20] sm:$0xf]
    %v192 = vld [vmem:[#allocation5 + $0x24] sm:$0xf]
    %v193 = vld [vmem:[#allocation5 + $0x28] sm:$0xf]
    %v194 = vld [vmem:[#allocation5 + $0x2c] sm:$0xf]
    %v195 = vld [vmem:[#allocation5 + $0x30] sm:$0xf]
    %v196 = vld [vmem:[#allocation5 + $0x34] sm:$0xf]
    %v197 = vld [vmem:[#allocation5 + $0x38] sm:$0xf]
    %v198 = vld [vmem:[#allocation5 + $0x3c] sm:$0xf]
    %v199 = vpack.c.bf16 %v182, %v182
    %v200 = vld [vmem:[%s5] sm:$0x1]
    %v202 = vlaneseq
    %v203 = vshrl.u32 %v202, 7
    %v204 = vsub.s32 0, %v203
    %v205 = vrot.slane %v200, %v204
    %v223 = vunpack.c.l.b16 %v183
    %v224 = vunpack.c.l.b16 %v184
    %v225 = vunpack.c.l.b16 %v185
    %v226 = vunpack.c.l.b16 %v186
    %v227 = vunpack.c.l.b16 %v187
    %v228 = vunpack.c.l.b16 %v188
    %v229 = vunpack.c.l.b16 %v189
    %v230 = vunpack.c.l.b16 %v190
    %v231 = vunpack.c.l.b16 %v191
    %v232 = vunpack.c.l.b16 %v192
    %v233 = vunpack.c.l.b16 %v193
    %v234 = vunpack.c.l.b16 %v194
    %v235 = vunpack.c.l.b16 %v195
    %v236 = vunpack.c.l.b16 %v196
    %v237 = vunpack.c.l.b16 %v197
    %v238 = vunpack.c.l.b16 %v198
    %v239 = vpack.c.b16 %v224, %v223
    %v240 = vpack.c.b16 %v226, %v225
    %v241 = vpack.c.b16 %v228, %v227
    %v242 = vpack.c.b16 %v230, %v229
    %v243 = vpack.c.b16 %v232, %v231
    %v244 = vpack.c.b16 %v234, %v233
    %v245 = vpack.c.b16 %v236, %v235
    %v246 = vpack.c.b16 %v238, %v237
    %255 = vmatprep.subr.bf16.mxu0 0
    %256 = vmatpush1.bf16.msra.mxu0 %v246
    %257 = vmatprep.subr.bf16.mxu0 0
    %258 = vmatpush1.bf16.msra.mxu0 %v245
    %259 = vmatprep.subr.bf16.mxu0 0
    %260 = vmatpush1.bf16.msra.mxu0 %v244
    %261 = vmatprep.subr.bf16.mxu0 0
    %262 = vmatpush1.bf16.msra.mxu0 %v243
    %263 = vmatprep.subr.bf16.mxu0 0
    %264 = vmatpush1.bf16.msra.mxu0 %v242
    %265 = vmatprep.subr.bf16.mxu0 0
    %266 = vmatpush1.bf16.msra.mxu0 %v241
    %267 = vmatprep.subr.bf16.mxu0 0
    %268 = vmatpush1.bf16.msra.mxu0 %v240
    %269 = vmatprep.subr.bf16.mxu0 0
    %270 = vmatpush1.bf16.msra.mxu0 %v239
    %271 = vmatprep.subr.bf16.mxu0 0
    %272 = vmatpush2.bf16.msra.mxu0 0
    %273 = vmatprep.subr.bf16.mxu0 0
    %274 = vmatpush2.bf16.msra.mxu0 0
    %275 = vmatprep.subr.bf16.mxu0 0
    %276 = vmatpush2.bf16.msra.mxu0 0
    %277 = vmatprep.subr.bf16.mxu0 0
    %278 = vmatpush2.bf16.msra.mxu0 0
    %279 = vmatprep.subr.bf16.mxu0 0
    %280 = vmatpush2.bf16.msra.mxu0 0
    %281 = vmatprep.subr.bf16.mxu0 0
    %282 = vmatpush2.bf16.msra.mxu0 0
    %283 = vmatprep.subr.bf16.mxu0 0
    %284 = vmatpush2.bf16.msra.mxu0 0
    %285 = vmatprep.subr.bf16.mxu0 0
    %286 = vmatpush2.bf16.msra.mxu0 0
    %287 = vmatprep.mubr.bf16.mxu0 0
    %288 = vmatmul.mubr.bf16.gmra.mxu0 %v199
    %v289 = vpop.f32.mrf.mxu0
    %v290 = vadd.f32 %v205, %v289
    %v291 = vpop.f32.mrf.mxu0
    %v292 = vpop.f32.mrf.mxu0
    %v293 = vpop.f32.mrf.mxu0
    %294 = vdwg.mxu0
    %v295 = vmax.f32 %v290, 0.0
    %v296 = vld [vmem:[#allocation7] sm:$0xf]
    %v297 = vld [vmem:[#allocation7 + $0x4] sm:$0xf]
    %v298 = vld [vmem:[#allocation7 + $0x8] sm:$0xf]
    %v299 = vld [vmem:[#allocation7 + $0xc] sm:$0xf]
    %v300 = vld [vmem:[#allocation7 + $0x10] sm:$0xf]
    %v301 = vld [vmem:[#allocation7 + $0x14] sm:$0xf]
    %v302 = vld [vmem:[#allocation7 + $0x18] sm:$0xf]
    %v303 = vld [vmem:[#allocation7 + $0x1c] sm:$0xf]
    %v304 = vld [vmem:[#allocation7 + $0x20] sm:$0xf]
    %v305 = vld [vmem:[#allocation7 + $0x24] sm:$0xf]
    %v306 = vld [vmem:[#allocation7 + $0x28] sm:$0xf]
    %v307 = vld [vmem:[#allocation7 + $0x2c] sm:$0xf]
    %v308 = vld [vmem:[#allocation7 + $0x30] sm:$0xf]
    %v309 = vld [vmem:[#allocation7 + $0x34] sm:$0xf]
    %v310 = vld [vmem:[#allocation7 + $0x38] sm:$0xf]
    %v311 = vld [vmem:[#allocation7 + $0x3c] sm:$0xf]
    %v312 = vpack.c.bf16 %v295, %v295
    %v313 = vld [vmem:[%s6] sm:$0x1]
    %v315 = vlaneseq
    %v316 = vshrl.u32 %v315, 7
    %v317 = vsub.s32 0, %v316
    %v318 = vrot.slane %v313, %v317
    %v336 = vunpack.c.l.b16 %v296
    %v337 = vunpack.c.l.b16 %v297
    %v338 = vunpack.c.l.b16 %v298
    %v339 = vunpack.c.l.b16 %v299
    %v340 = vunpack.c.l.b16 %v300
    %v341 = vunpack.c.l.b16 %v301
    %v342 = vunpack.c.l.b16 %v302
    %v343 = vunpack.c.l.b16 %v303
    %v344 = vunpack.c.l.b16 %v304
    %v345 = vunpack.c.l.b16 %v305
    %v346 = vunpack.c.l.b16 %v306
    %v347 = vunpack.c.l.b16 %v307
    %v348 = vunpack.c.l.b16 %v308
    %v349 = vunpack.c.l.b16 %v309
    %v350 = vunpack.c.l.b16 %v310
    %v351 = vunpack.c.l.b16 %v311
    %v352 = vpack.c.b16 %v337, %v336
    %v353 = vpack.c.b16 %v339, %v338
    %v354 = vpack.c.b16 %v341, %v340
    %v355 = vpack.c.b16 %v343, %v342
    %v356 = vpack.c.b16 %v345, %v344
    %v357 = vpack.c.b16 %v347, %v346
    %v358 = vpack.c.b16 %v349, %v348
    %v359 = vpack.c.b16 %v351, %v350
    %368 = vmatprep.subr.bf16.mxu0 0
    %369 = vmatpush1.bf16.msra.mxu0 %v359
    %370 = vmatprep.subr.bf16.mxu0 0
    %371 = vmatpush1.bf16.msra.mxu0 %v358
    %372 = vmatprep.subr.bf16.mxu0 0
    %373 = vmatpush1.bf16.msra.mxu0 %v357
    %374 = vmatprep.subr.bf16.mxu0 0
    %375 = vmatpush1.bf16.msra.mxu0 %v356
    %376 = vmatprep.subr.bf16.mxu0 0
    %377 = vmatpush1.bf16.msra.mxu0 %v355
    %378 = vmatprep.subr.bf16.mxu0 0
    %379 = vmatpush1.bf16.msra.mxu0 %v354
    %380 = vmatprep.subr.bf16.mxu0 0
    %381 = vmatpush1.bf16.msra.mxu0 %v353
    %382 = vmatprep.subr.bf16.mxu0 0
    %383 = vmatpush1.bf16.msra.mxu0 %v352
    %384 = vmatprep.subr.bf16.mxu0 0
    %385 = vmatpush2.bf16.msra.mxu0 0
    %386 = vmatprep.subr.bf16.mxu0 0
    %387 = vmatpush2.bf16.msra.mxu0 0
    %388 = vmatprep.subr.bf16.mxu0 0
    %389 = vmatpush2.bf16.msra.mxu0 0
    %390 = vmatprep.subr.bf16.mxu0 0
    %391 = vmatpush2.bf16.msra.mxu0 0
    %392 = vmatprep.subr.bf16.mxu0 0
    %393 = vmatpush2.bf16.msra.mxu0 0
    %394 = vmatprep.subr.bf16.mxu0 0
    %395 = vmatpush2.bf16.msra.mxu0 0
    %396 = vmatprep.subr.bf16.mxu0 0
    %397 = vmatpush2.bf16.msra.mxu0 0
    %398 = vmatprep.subr.bf16.mxu0 0
    %399 = vmatpush2.bf16.msra.mxu0 0
    %400 = vmatprep.mubr.bf16.mxu0 0
    %401 = vmatmul.mubr.bf16.gmra.mxu0 %v312
    %v402 = vpop.f32.mrf.mxu0
    %v403 = vadd.f32 %v318, %v402
    %v404 = vpop.f32.mrf.mxu0
    %v405 = vpop.f32.mrf.mxu0
    %v406 = vpop.f32.mrf.mxu0
    %407 = vdwg.mxu0
    %408 = vst [vmem:[#allocation8] sm:$0xff] %v403
    // Predicated region
    $region42: #{mlp_pallas.1} parent=1 // pred_check
      _
    $region43: #{mlp_pallas.1} parent=1 // pred_check_branch
      %410 = sbr.rel (0) target = $region45
    $region44: #{mlp_pallas.1} parent=1 // pred_region
      %s412 = ssub.s32 128, 128
      %413 = vsyncadd [#allocation4], %s412
      %s415 = sshll.u32 [#allocation8], 4
      %s416 = int_to_ptr.vmem [resolvable:$true] %s415
      %418 = dma.vmem_to_hbm [thread:$0]  %s416, 128, %s7, [#allocation4]
    $region45: #{mlp_pallas.1} parent=1 // pred_fallthru
      _
    // Predicated region
    $region46: #{mlp_pallas.1} parent=1 // pred_check
      _
    $region47: #{mlp_pallas.1} parent=1 // pred_check_branch
      %420 = sbr.rel (0) target = $region49
    $region48: #{mlp_pallas.1} parent=1 // pred_region
      %421 = dma.done [#allocation4], 128
    $region49: #{mlp_pallas.1} parent=1 // pred_fallthru
      _
    %422 = vsyncpa [#allocation3], 1
    %423 = vsyncpa [#allocation6], 1
    %424 = vsyncpa [#allocation4], 1

// kernel: mlp_pallas.1
$region0: #{mlp_pallas.1}
  #allocation0 [shape = 'u32[]', space=smem, size = 0x4, offset = 0x4, fixed_abs, tag = 'smem constant byte address 0x4 - core index']
  #allocation1 [shape = 'u32[144,128]{1,0:T(1,128)}', space=vmem, size = 0x12000, scoped, tag = 'internal scratch']
  %s0 = inlined_call_operand.vmem [shape: f32[8,128], index: 0, kind: input, shape index: {}]
  %s1 = inlined_call_operand.hbm [shape: bf16[128,128], index: 1, kind: input, shape index: {}]
  %s2 = inlined_call_operand.hbm [shape: bf16[128,128], index: 2, kind: input, shape index: {}]
  %s3 = inlined_call_operand.hbm [shape: bf16[128,128], index: 3, kind: input, shape index: {}]
  %s4 = inlined_call_operand.vmem [shape: f32[1,128], index: 4, kind: input, shape index: {}]
  %s5 = inlined_call_operand.vmem [shape: f32[1,128], index: 5, kind: input, shape index: {}]
  %s6 = inlined_call_operand.vmem [shape: f32[1,128], index: 6, kind: input, shape index: {}]
  %s7 = inlined_call_operand.hbm [shape: f32[8,128], index: 7, kind: output, shape index: {}]
  %s8 = sld [smem:[#allocation0]]
  $region50: #{mlp_pallas.1} parent=0
    _
  %s10 = ssub.s32 1, %s8
  %s11 = scalar_select 0, %s10, %s8
  $region1: #{mlp_pallas.1} parent=0
    #allocation2 [shape = 'u8[32768]{0}', space=vmem, size = 0x8000, scoped, tag = 'input window, operand 1, single buffered']
    #allocation3 [shape = 's32[1]{0}', space=sflag, size = 0x4, scoped, tag = 'scoped memory for mlp_pallas.1']
    #allocation4 [shape = 's32[1]{0}', space=sflag, size = 0x4, scoped, tag = 'scoped memory for mlp_pallas.1']
    #allocation5 [shape = 'u8[32768]{0}', space=vmem, size = 0x8000, scoped, tag = 'input window, operand 2, single buffered']
    #allocation6 [shape = 's32[1]{0}', space=sflag, size = 0x4, scoped, tag = 'scoped memory for mlp_pallas.1']
    #allocation7 [shape = 'u8[32768]{0}', space=vmem, size = 0x8000, scoped, tag = 'input window, operand 3, single buffered']
    #allocation8 [shape = 'u8[4096]{0}', space=vmem, size = 0x1000, scoped, tag = 'output window, operand 0, single buffered']
    %12 = vsyncpa [#allocation3], 0
    %13 = vsyncpa [#allocation6], 0
    %14 = vsyncpa [#allocation4], 0
    // Predicated region
    $region2: #{mlp_pallas.1} parent=1 // pred_check
      _
    $region3: #{mlp_pallas.1} parent=1 // pred_check_branch
      %16 = sbr.rel (0) target = $region5
    $region4: #{mlp_pallas.1} parent=1 // pred_region
      _
    $region5: #{mlp_pallas.1} parent=1 // pred_fallthru
      _
    // Predicated region
    $region6: #{mlp_pallas.1} parent=1 // pred_check
      _
    $region7: #{mlp_pallas.1} parent=1 // pred_check_branch
      %18 = sbr.rel (0) target = $region9
    $region8: #{mlp_pallas.1} parent=1 // pred_region
      %s20 = ssub.s32 1024, 1024
      %21 = vsyncadd [#allocation3], %s20
      %s22 = sshll.u32 [#allocation2], 4
      %s23 = int_to_ptr.vmem [resolvable:$true] %s22
      %28 = dma.hbm_to_vmem [thread:$0]  %s1, 1024, %s23, [#allocation3], 64, 64, 4
    $region9: #{mlp_pallas.1} parent=1 // pred_fallthru
      _
    // Predicated region
    $region10: #{mlp_pallas.1} parent=1 // pred_check
      _
    $region11: #{mlp_pallas.1} parent=1 // pred_check_branch
      %30 = sbr.rel (0) target = $region13
    $region12: #{mlp_pallas.1} parent=1 // pred_region
      %s32 = ssub.s32 1024, 1024
      %33 = vsyncadd [#allocation6], %s32
      %s34 = sshll.u32 [#allocation5], 4
      %s35 = int_to_ptr.vmem [resolvable:$true] %s34
      %40 = dma.hbm_to_vmem [thread:$0]  %s2, 1024, %s35, [#allocation6], 64, 64, 4
    $region13: #{mlp_pallas.1} parent=1 // pred_fallthru
      _
    // Predicated region
    $region14: #{mlp_pallas.1} parent=1 // pred_check
      _
    $region15: #{mlp_pallas.1} parent=1 // pred_check_branch
      %42 = sbr.rel (0) target = $region17
    $region16: #{mlp_pallas.1} parent=1 // pred_region
      %s44 = ssub.s32 1024, 1024
      %45 = vsyncadd [#allocation6], %s44
      %s46 = sshll.u32 [#allocation7], 4
      %s47 = int_to_ptr.vmem [resolvable:$true] %s46
      %52 = dma.hbm_to_vmem [thread:$0]  %s3, 1024, %s47, [#allocation6], 64, 64, 4
    $region17: #{mlp_pallas.1} parent=1 // pred_fallthru
      _
    // Predicated region
    $region18: #{mlp_pallas.1} parent=1 // pred_check
      _
    $region19: #{mlp_pallas.1} parent=1 // pred_check_branch
      %54 = sbr.rel (0) target = $region21
    $region20: #{mlp_pallas.1} parent=1 // pred_region
      _
    $region21: #{mlp_pallas.1} parent=1 // pred_fallthru
      _
    // Predicated region
    $region22: #{mlp_pallas.1} parent=1 // pred_check
      _
    $region23: #{mlp_pallas.1} parent=1 // pred_check_branch
      %56 = sbr.rel (0) target = $region25
    $region24: #{mlp_pallas.1} parent=1 // pred_region
      _
    $region25: #{mlp_pallas.1} parent=1 // pred_fallthru
      _
    // Predicated region
    $region26: #{mlp_pallas.1} parent=1 // pred_check
      _
    $region27: #{mlp_pallas.1} parent=1 // pred_check_branch
      %58 = sbr.rel (0) target = $region29
    $region28: #{mlp_pallas.1} parent=1 // pred_region
      _
    $region29: #{mlp_pallas.1} parent=1 // pred_fallthru
      _
    // Predicated region
    $region30: #{mlp_pallas.1} parent=1 // pred_check
      _
    $region31: #{mlp_pallas.1} parent=1 // pred_check_branch
      %60 = sbr.rel (0) target = $region33
    $region32: #{mlp_pallas.1} parent=1 // pred_region
      %61 = dma.done [#allocation3], 1024
    $region33: #{mlp_pallas.1} parent=1 // pred_fallthru
      _
    // Predicated region
    $region34: #{mlp_pallas.1} parent=1 // pred_check
      _
    $region35: #{mlp_pallas.1} parent=1 // pred_check_branch
      %63 = sbr.rel (0) target = $region37
    $region36: #{mlp_pallas.1} parent=1 // pred_region
      %64 = dma.done [#allocation6], 1024
    $region37: #{mlp_pallas.1} parent=1 // pred_fallthru
      _
    // Predicated region
    $region38: #{mlp_pallas.1} parent=1 // pred_check
      _
    $region39: #{mlp_pallas.1} parent=1 // pred_check_branch
      %66 = sbr.rel (0) target = $region41
    $region40: #{mlp_pallas.1} parent=1 // pred_region
      %67 = dma.done [#allocation6], 1024
    $region41: #{mlp_pallas.1} parent=1 // pred_fallthru
      _
    %v69 = vld [vmem:[%s0] sm:$0xff]
    %v70 = vld [vmem:[#allocation2] sm:$0xf]
    %v71 = vld [vmem:[#allocation2 + $0x4] sm:$0xf]
    %v72 = vld [vmem:[#allocation2 + $0x8] sm:$0xf]
    %v73 = vld [vmem:[#allocation2 + $0xc] sm:$0xf]
    %v74 = vld [vmem:[#allocation2 + $0x10] sm:$0xf]
    %v75 = vld [vmem:[#allocation2 + $0x14] sm:$0xf]
    %v76 = vld [vmem:[#allocation2 + $0x18] sm:$0xf]
    %v77 = vld [vmem:[#allocation2 + $0x1c] sm:$0xf]
    %v78 = vld [vmem:[#allocation2 + $0x20] sm:$0xf]
    %v79 = vld [vmem:[#allocation2 + $0x24] sm:$0xf]
    %v80 = vld [vmem:[#allocation2 + $0x28] sm:$0xf]
    %v81 = vld [vmem:[#allocation2 + $0x2c] sm:$0xf]
    %v82 = vld [vmem:[#allocation2 + $0x30] sm:$0xf]
    %v83 = vld [vmem:[#allocation2 + $0x34] sm:$0xf]
    %v84 = vld [vmem:[#allocation2 + $0x38] sm:$0xf]
    %v85 = vld [vmem:[#allocation2 + $0x3c] sm:$0xf]
    %v86 = vpack.c.bf16 %v69, %v69
    %v87 = vld [vmem:[%s4] sm:$0x1]
    %v89 = vlaneseq
    %v90 = vshrl.u32 %v89, 7
    %v91 = vsub.s32 0, %v90
    %v92 = vrot.slane %v87, %v91
    %v110 = vunpack.c.l.b16 %v70
    %v111 = vunpack.c.l.b16 %v71
    %v112 = vunpack.c.l.b16 %v72
    %v113 = vunpack.c.l.b16 %v73
    %v114 = vunpack.c.l.b16 %v74
    %v115 = vunpack.c.l.b16 %v75
    %v116 = vunpack.c.l.b16 %v76
    %v117 = vunpack.c.l.b16 %v77
    %v118 = vunpack.c.l.b16 %v78
    %v119 = vunpack.c.l.b16 %v79
    %v120 = vunpack.c.l.b16 %v80
    %v121 = vunpack.c.l.b16 %v81
    %v122 = vunpack.c.l.b16 %v82
    %v123 = vunpack.c.l.b16 %v83
    %v124 = vunpack.c.l.b16 %v84
    %v125 = vunpack.c.l.b16 %v85
    %v126 = vpack.c.b16 %v111, %v110
    %v127 = vpack.c.b16 %v113, %v112
    %v128 = vpack.c.b16 %v115, %v114
    %v129 = vpack.c.b16 %v117, %v116
    %v130 = vpack.c.b16 %v119, %v118
    %v131 = vpack.c.b16 %v121, %v120
    %v132 = vpack.c.b16 %v123, %v122
    %v133 = vpack.c.b16 %v125, %v124
    %142 = vmatprep.subr.bf16.mxu0 0
    %143 = vmatpush1.bf16.msra.mxu0 %v133
    %144 = vmatprep.subr.bf16.mxu0 0
    %145 = vmatpush1.bf16.msra.mxu0 %v132
    %146 = vmatprep.subr.bf16.mxu0 0
    %147 = vmatpush1.bf16.msra.mxu0 %v131
    %148 = vmatprep.subr.bf16.mxu0 0
    %149 = vmatpush1.bf16.msra.mxu0 %v130
    %150 = vmatprep.subr.bf16.mxu0 0
    %151 = vmatpush1.bf16.msra.mxu0 %v129
    %152 = vmatprep.subr.bf16.mxu0 0
    %153 = vmatpush1.bf16.msra.mxu0 %v128
    %154 = vmatprep.subr.bf16.mxu0 0
    %155 = vmatpush1.bf16.msra.mxu0 %v127
    %156 = vmatprep.subr.bf16.mxu0 0
    %157 = vmatpush1.bf16.msra.mxu0 %v126
    %158 = vmatprep.subr.bf16.mxu0 0
    %159 = vmatpush2.bf16.msra.mxu0 0
    %160 = vmatprep.subr.bf16.mxu0 0
    %161 = vmatpush2.bf16.msra.mxu0 0
    %162 = vmatprep.subr.bf16.mxu0 0
    %163 = vmatpush2.bf16.msra.mxu0 0
    %164 = vmatprep.subr.bf16.mxu0 0
    %165 = vmatpush2.bf16.msra.mxu0 0
    %166 = vmatprep.subr.bf16.mxu0 0
    %167 = vmatpush2.bf16.msra.mxu0 0
    %168 = vmatprep.subr.bf16.mxu0 0
    %169 = vmatpush2.bf16.msra.mxu0 0
    %170 = vmatprep.subr.bf16.mxu0 0
    %171 = vmatpush2.bf16.msra.mxu0 0
    %172 = vmatprep.subr.bf16.mxu0 0
    %173 = vmatpush2.bf16.msra.mxu0 0
    %174 = vmatprep.mubr.bf16.mxu0 0
    %175 = vmatmul.mubr.bf16.gmra.mxu0 %v86
    %v176 = vpop.f32.mrf.mxu0
    %v177 = vadd.f32 %v92, %v176
    %v178 = vpop.f32.mrf.mxu0
    %v179 = vpop.f32.mrf.mxu0
    %v180 = vpop.f32.mrf.mxu0
    %181 = vdwg.mxu0
    %v182 = vmax.f32 %v177, 0.0
    %v183 = vld [vmem:[#allocation5] sm:$0xf]
    %v184 = vld [vmem:[#allocation5 + $0x4] sm:$0xf]
    %v185 = vld [vmem:[#allocation5 + $0x8] sm:$0xf]
    %v186 = vld [vmem:[#allocation5 + $0xc] sm:$0xf]
    %v187 = vld [vmem:[#allocation5 + $0x10] sm:$0xf]
    %v188 = vld [vmem:[#allocation5 + $0x14] sm:$0xf]
    %v189 = vld [vmem:[#allocation5 + $0x18] sm:$0xf]
    %v190 = vld [vmem:[#allocation5 + $0x1c] sm:$0xf]
    %v191 = vld [vmem:[#allocation5 + $0x20] sm:$0xf]
    %v192 = vld [vmem:[#allocation5 + $0x24] sm:$0xf]
    %v193 = vld [vmem:[#allocation5 + $0x28] sm:$0xf]
    %v194 = vld [vmem:[#allocation5 + $0x2c] sm:$0xf]
    %v195 = vld [vmem:[#allocation5 + $0x30] sm:$0xf]
    %v196 = vld [vmem:[#allocation5 + $0x34] sm:$0xf]
    %v197 = vld [vmem:[#allocation5 + $0x38] sm:$0xf]
    %v198 = vld [vmem:[#allocation5 + $0x3c] sm:$0xf]
    %v199 = vpack.c.bf16 %v182, %v182
    %v200 = vld [vmem:[%s5] sm:$0x1]
    %v202 = vlaneseq
    %v203 = vshrl.u32 %v202, 7
    %v204 = vsub.s32 0, %v203
    %v205 = vrot.slane %v200, %v204
    %v223 = vunpack.c.l.b16 %v183
    %v224 = vunpack.c.l.b16 %v184
    %v225 = vunpack.c.l.b16 %v185
    %v226 = vunpack.c.l.b16 %v186
    %v227 = vunpack.c.l.b16 %v187
    %v228 = vunpack.c.l.b16 %v188
    %v229 = vunpack.c.l.b16 %v189
    %v230 = vunpack.c.l.b16 %v190
    %v231 = vunpack.c.l.b16 %v191
    %v232 = vunpack.c.l.b16 %v192
    %v233 = vunpack.c.l.b16 %v193
    %v234 = vunpack.c.l.b16 %v194
    %v235 = vunpack.c.l.b16 %v195
    %v236 = vunpack.c.l.b16 %v196
    %v237 = vunpack.c.l.b16 %v197
    %v238 = vunpack.c.l.b16 %v198
    %v239 = vpack.c.b16 %v224, %v223
    %v240 = vpack.c.b16 %v226, %v225
    %v241 = vpack.c.b16 %v228, %v227
    %v242 = vpack.c.b16 %v230, %v229
    %v243 = vpack.c.b16 %v232, %v231
    %v244 = vpack.c.b16 %v234, %v233
    %v245 = vpack.c.b16 %v236, %v235
    %v246 = vpack.c.b16 %v238, %v237
    %255 = vmatprep.subr.bf16.mxu0 0
    %256 = vmatpush1.bf16.msra.mxu0 %v246
    %257 = vmatprep.subr.bf16.mxu0 0
    %258 = vmatpush1.bf16.msra.mxu0 %v245
    %259 = vmatprep.subr.bf16.mxu0 0
    %260 = vmatpush1.bf16.msra.mxu0 %v244
    %261 = vmatprep.subr.bf16.mxu0 0
    %262 = vmatpush1.bf16.msra.mxu0 %v243
    %263 = vmatprep.subr.bf16.mxu0 0
    %264 = vmatpush1.bf16.msra.mxu0 %v242
    %265 = vmatprep.subr.bf16.mxu0 0
    %266 = vmatpush1.bf16.msra.mxu0 %v241
    %267 = vmatprep.subr.bf16.mxu0 0
    %268 = vmatpush1.bf16.msra.mxu0 %v240
    %269 = vmatprep.subr.bf16.mxu0 0
    %270 = vmatpush1.bf16.msra.mxu0 %v239
    %271 = vmatprep.subr.bf16.mxu0 0
    %272 = vmatpush2.bf16.msra.mxu0 0
    %273 = vmatprep.subr.bf16.mxu0 0
    %274 = vmatpush2.bf16.msra.mxu0 0
    %275 = vmatprep.subr.bf16.mxu0 0
    %276 = vmatpush2.bf16.msra.mxu0 0
    %277 = vmatprep.subr.bf16.mxu0 0
    %278 = vmatpush2.bf16.msra.mxu0 0
    %279 = vmatprep.subr.bf16.mxu0 0
    %280 = vmatpush2.bf16.msra.mxu0 0
    %281 = vmatprep.subr.bf16.mxu0 0
    %282 = vmatpush2.bf16.msra.mxu0 0
    %283 = vmatprep.subr.bf16.mxu0 0
    %284 = vmatpush2.bf16.msra.mxu0 0
    %285 = vmatprep.subr.bf16.mxu0 0
    %286 = vmatpush2.bf16.msra.mxu0 0
    %287 = vmatprep.mubr.bf16.mxu0 0
    %288 = vmatmul.mubr.bf16.gmra.mxu0 %v199
    %v289 = vpop.f32.mrf.mxu0
    %v290 = vadd.f32 %v205, %v289
    %v291 = vpop.f32.mrf.mxu0
    %v292 = vpop.f32.mrf.mxu0
    %v293 = vpop.f32.mrf.mxu0
    %294 = vdwg.mxu0
    %v295 = vmax.f32 %v290, 0.0
    %v296 = vld [vmem:[#allocation7] sm:$0xf]
    %v297 = vld [vmem:[#allocation7 + $0x4] sm:$0xf]
    %v298 = vld [vmem:[#allocation7 + $0x8] sm:$0xf]
    %v299 = vld [vmem:[#allocation7 + $0xc] sm:$0xf]
    %v300 = vld [vmem:[#allocation7 + $0x10] sm:$0xf]
    %v301 = vld [vmem:[#allocation7 + $0x14] sm:$0xf]
    %v302 = vld [vmem:[#allocation7 + $0x18] sm:$0xf]
    %v303 = vld [vmem:[#allocation7 + $0x1c] sm:$0xf]
    %v304 = vld [vmem:[#allocation7 + $0x20] sm:$0xf]
    %v305 = vld [vmem:[#allocation7 + $0x24] sm:$0xf]
    %v306 = vld [vmem:[#allocation7 + $0x28] sm:$0xf]
    %v307 = vld [vmem:[#allocation7 + $0x2c] sm:$0xf]
    %v308 = vld [vmem:[#allocation7 + $0x30] sm:$0xf]
    %v309 = vld [vmem:[#allocation7 + $0x34] sm:$0xf]
    %v310 = vld [vmem:[#allocation7 + $0x38] sm:$0xf]
    %v311 = vld [vmem:[#allocation7 + $0x3c] sm:$0xf]
    %v312 = vpack.c.bf16 %v295, %v295
    %v313 = vld [vmem:[%s6] sm:$0x1]
    %v315 = vlaneseq
    %v316 = vshrl.u32 %v315, 7
    %v317 = vsub.s32 0, %v316
    %v318 = vrot.slane %v313, %v317
    %v336 = vunpack.c.l.b16 %v296
    %v337 = vunpack.c.l.b16 %v297
    %v338 = vunpack.c.l.b16 %v298
    %v339 = vunpack.c.l.b16 %v299
    %v340 = vunpack.c.l.b16 %v300
    %v341 = vunpack.c.l.b16 %v301
    %v342 = vunpack.c.l.b16 %v302
    %v343 = vunpack.c.l.b16 %v303
    %v344 = vunpack.c.l.b16 %v304
    %v345 = vunpack.c.l.b16 %v305
    %v346 = vunpack.c.l.b16 %v306
    %v347 = vunpack.c.l.b16 %v307
    %v348 = vunpack.c.l.b16 %v308
    %v349 = vunpack.c.l.b16 %v309
    %v350 = vunpack.c.l.b16 %v310
    %v351 = vunpack.c.l.b16 %v311
    %v352 = vpack.c.b16 %v337, %v336
    %v353 = vpack.c.b16 %v339, %v338
    %v354 = vpack.c.b16 %v341, %v340
    %v355 = vpack.c.b16 %v343, %v342
    %v356 = vpack.c.b16 %v345, %v344
    %v357 = vpack.c.b16 %v347, %v346
    %v358 = vpack.c.b16 %v349, %v348
    %v359 = vpack.c.b16 %v351, %v350
    %368 = vmatprep.subr.bf16.mxu0 0
    %369 = vmatpush1.bf16.msra.mxu0 %v359
    %370 = vmatprep.subr.bf16.mxu0 0
    %371 = vmatpush1.bf16.msra.mxu0 %v358
    %372 = vmatprep.subr.bf16.mxu0 0
    %373 = vmatpush1.bf16.msra.mxu0 %v357
    %374 = vmatprep.subr.bf16.mxu0 0
    %375 = vmatpush1.bf16.msra.mxu0 %v356
    %376 = vmatprep.subr.bf16.mxu0 0
    %377 = vmatpush1.bf16.msra.mxu0 %v355
    %378 = vmatprep.subr.bf16.mxu0 0
    %379 = vmatpush1.bf16.msra.mxu0 %v354
    %380 = vmatprep.subr.bf16.mxu0 0
    %381 = vmatpush1.bf16.msra.mxu0 %v353
    %382 = vmatprep.subr.bf16.mxu0 0
    %383 = vmatpush1.bf16.msra.mxu0 %v352
    %384 = vmatprep.subr.bf16.mxu0 0
    %385 = vmatpush2.bf16.msra.mxu0 0
    %386 = vmatprep.subr.bf16.mxu0 0
    %387 = vmatpush2.bf16.msra.mxu0 0
    %388 = vmatprep.subr.bf16.mxu0 0
    %389 = vmatpush2.bf16.msra.mxu0 0
    %390 = vmatprep.subr.bf16.mxu0 0
    %391 = vmatpush2.bf16.msra.mxu0 0
    %392 = vmatprep.subr.bf16.mxu0 0
    %393 = vmatpush2.bf16.msra.mxu0 0
    %394 = vmatprep.subr.bf16.mxu0 0
    %395 = vmatpush2.bf16.msra.mxu0 0
    %396 = vmatprep.subr.bf16.mxu0 0
    %397 = vmatpush2.bf16.msra.mxu0 0
    %398 = vmatprep.subr.bf16.mxu0 0
    %399 = vmatpush2.bf16.msra.mxu0 0
    %400 = vmatprep.mubr.bf16.mxu0 0
    %401 = vmatmul.mubr.bf16.gmra.mxu0 %v312
    %v402 = vpop.f32.mrf.mxu0
    %v403 = vadd.f32 %v318, %v402
    %v404 = vpop.f32.mrf.mxu0
    %v405 = vpop.f32.mrf.mxu0
    %v406 = vpop.f32.mrf.mxu0
    %407 = vdwg.mxu0
    %408 = vst [vmem:[#allocation8] sm:$0xff] %v403
    // Predicated region
    $region42: #{mlp_pallas.1} parent=1 // pred_check
      _
    $region43: #{mlp_pallas.1} parent=1 // pred_check_branch
      %410 = sbr.rel (0) target = $region45
    $region44: #{mlp_pallas.1} parent=1 // pred_region
      %s412 = ssub.s32 128, 128
      %413 = vsyncadd [#allocation4], %s412
      %s415 = sshll.u32 [#allocation8], 4
      %s416 = int_to_ptr.vmem [resolvable:$true] %s415
      %418 = dma.vmem_to_hbm [thread:$0]  %s416, 128, %s7, [#allocation4]
    $region45: #{mlp_pallas.1} parent=1 // pred_fallthru
      _
    // Predicated region
    $region46: #{mlp_pallas.1} parent=1 // pred_check
      _
    $region47: #{mlp_pallas.1} parent=1 // pred_check_branch
      %420 = sbr.rel (0) target = $region49
    $region48: #{mlp_pallas.1} parent=1 // pred_region
      %421 = dma.done [#allocation4], 128
    $region49: #{mlp_pallas.1} parent=1 // pred_fallthru
      _
    %422 = vsyncpa [#allocation3], 1
    %423 = vsyncpa [#allocation6], 1
    %424 = vsyncpa [#allocation4], 1

</llo_original>
